<compile_context>
chip_gen: v5e
topology: v5e:2x2
jax: 0.10.0
libtpu: 0.0.40
codegen_flags: <defaults>
</compile_context>

<pallas_src>
import functools

import jax
import jax.numpy as jnp
from jax import lax
from jax.experimental import pallas as pl
from jax.experimental.pallas import tpu as pltpu


# ------------------------------ tiling helpers ------------------------------ #

def _tile_sub(dim, pref):
    """Tile for a second-to-last (sublane) dim: multiple of 8, or the full dim."""
    for t in (pref, pref // 2, pref // 4, 256, 128, 64, 32, 16, 8):
        if 0 < t <= dim and dim % t == 0 and t % 8 == 0:
            return t
    return dim


def _tile_lane(dim, pref):
    """Tile for a last (lane) dim: multiple of 128, or the full dim."""
    for t in (pref, pref // 2, pref // 4, 512, 256, 128):
        if 0 < t <= dim and dim % t == 0 and t % 128 == 0:
            return t
    return dim


def _is_bf16(dtype):
    return jnp.dtype(dtype) == jnp.dtype(jnp.bfloat16)


# ------------------------- fused LayerNorm + matmul -------------------------- #

def _ln_matmul_kernel(x_ref, g_ref, beta_ref, w_ref, b_ref, o_ref, *,
                      eps, compute_dtype):
    x = x_ref[...].astype(jnp.float32)                        # (tm, K)
    mean = jnp.mean(x, axis=-1, keepdims=True)
    var = jnp.mean((x - mean) ** 2, axis=-1, keepdims=True)   # biased, like torch
    xn = (x - mean) * lax.rsqrt(var + eps)
    xn = xn * g_ref[...].astype(jnp.float32) + beta_ref[...].astype(jnp.float32)
    acc = jnp.dot(xn.astype(compute_dtype), w_ref[...].astype(compute_dtype),
                  preferred_element_type=jnp.float32)
    acc = acc + b_ref[...].astype(jnp.float32)
    o_ref[...] = acc.astype(o_ref.dtype)


def fused_ln_matmul(x, gamma, beta, w, bias=None, *, eps=1e-5,
                    compute_dtype=jnp.float32, out_dtype=None, tm=512, tn=512):
    """out = LayerNorm(x) @ w (+ bias).  x: (M, K), w: (K, N)."""
    M, K = x.shape
    _, N = w.shape
    out_dtype = x.dtype if out_dtype is None else out_dtype
    tm = _tile_sub(M, tm)
    tn = _tile_lane(N, tn)
    if bias is None:
        bias = jnp.zeros((N,), jnp.float32)
    cost = pl.CostEstimate(
        flops=int(2 * M * N * K), transcendentals=0,
        bytes_accessed=int(x.size * x.dtype.itemsize + w.size * w.dtype.itemsize
                           + M * N * jnp.dtype(out_dtype).itemsize))
    return pl.pallas_call(
        functools.partial(_ln_matmul_kernel, eps=eps, compute_dtype=compute_dtype),
        out_shape=jax.ShapeDtypeStruct((M, N), out_dtype),
        grid=(M // tm, N // tn),
        in_specs=[pl.BlockSpec((tm, K), lambda i, j: (i, 0)),
                  pl.BlockSpec((1, K), lambda i, j: (0, 0)),
                  pl.BlockSpec((1, K), lambda i, j: (0, 0)),
                  pl.BlockSpec((K, tn), lambda i, j: (0, j)),
                  pl.BlockSpec((1, tn), lambda i, j: (0, j))],
        out_specs=pl.BlockSpec((tm, tn), lambda i, j: (i, j)),
        compiler_params=pltpu.CompilerParams(
            dimension_semantics=("parallel", "parallel")),
        cost_estimate=cost,
    )(x, gamma.reshape(1, K), beta.reshape(1, K), w, bias.reshape(1, N))


# -------------------- K-tiled matmul (+bias, +residual) ---------------------- #

def _mm_kernel(x_ref, w_ref, b_ref, o_ref, acc_ref, *, compute_dtype):
    @pl.when(pl.program_id(2) == 0)
    def _():
        acc_ref[...] = jnp.zeros_like(acc_ref)

    acc_ref[...] += jnp.dot(x_ref[...].astype(compute_dtype),
                            w_ref[...].astype(compute_dtype),
                            preferred_element_type=jnp.float32)

    @pl.when(pl.program_id(2) == pl.num_programs(2) - 1)
    def _():
        o_ref[...] = (acc_ref[...] + b_ref[...].astype(jnp.float32)).astype(o_ref.dtype)


def _mm_res_kernel(x_ref, w_ref, b_ref, r_ref, o_ref, acc_ref, *, compute_dtype):
    @pl.when(pl.program_id(2) == 0)
    def _():
        acc_ref[...] = jnp.zeros_like(acc_ref)

    acc_ref[...] += jnp.dot(x_ref[...].astype(compute_dtype),
                            w_ref[...].astype(compute_dtype),
                            preferred_element_type=jnp.float32)

    @pl.when(pl.program_id(2) == pl.num_programs(2) - 1)
    def _():
        out = (acc_ref[...] + b_ref[...].astype(jnp.float32)
               + r_ref[...].astype(jnp.float32))
        o_ref[...] = out.astype(o_ref.dtype)


def tiled_matmul(x, w, bias=None, residual=None, *, compute_dtype=jnp.float32,
                 out_dtype=None, tm=256, tn=256, tk=512):
    """out = x @ w (+ bias) (+ residual); 3-D grid with f32 VMEM accumulator."""
    M, K = x.shape
    _, N = w.shape
    out_dtype = x.dtype if out_dtype is None else out_dtype
    tm = _tile_sub(M, tm)
    tn = _tile_lane(N, tn)
    tk = _tile_lane(K, tk)
    if bias is None:
        bias = jnp.zeros((N,), jnp.float32)
    in_specs = [pl.BlockSpec((tm, tk), lambda i, j, k: (i, k)),
                pl.BlockSpec((tk, tn), lambda i, j, k: (k, j)),
                pl.BlockSpec((1, tn), lambda i, j, k: (0, j))]
    args = [x, w, bias.reshape(1, N)]
    if residual is None:
        kernel = functools.partial(_mm_kernel, compute_dtype=compute_dtype)
    else:
        in_specs.append(pl.BlockSpec((tm, tn), lambda i, j, k: (i, j)))
        args.append(residual)
        kernel = functools.partial(_mm_res_kernel, compute_dtype=compute_dtype)
    cost = pl.CostEstimate(
        flops=int(2 * M * N * K), transcendentals=0,
        bytes_accessed=int(x.size * x.dtype.itemsize + w.size * w.dtype.itemsize
                           + M * N * jnp.dtype(out_dtype).itemsize))
    return pl.pallas_call(
        kernel,
        out_shape=jax.ShapeDtypeStruct((M, N), out_dtype),
        grid=(M // tm, N // tn, K // tk),
        in_specs=in_specs,
        out_specs=pl.BlockSpec((tm, tn), lambda i, j, k: (i, j)),
        scratch_shapes=[pltpu.VMEM((tm, tn), jnp.float32)],
        compiler_params=pltpu.CompilerParams(
            dimension_semantics=("parallel", "parallel", "arbitrary")),
        cost_estimate=cost,
    )(*args)


# ---------- spatial-reduction conv (k=R, s=R) with LayerNorm1 fused ---------- #

def _sr_ln_conv_kernel(xs_ref, g_ref, beta_ref, w_ref, b_ref, o_ref, *,
                       C, nchunks, eps, compute_dtype):
    g = g_ref[...].astype(jnp.float32)
    be = beta_ref[...].astype(jnp.float32)
    acc = jnp.zeros((o_ref.shape[0], C), jnp.float32)
    for j in range(nchunks):                 # one chunk == one token of the RxR patch
        t = xs_ref[:, j * C:(j + 1) * C].astype(jnp.float32)
        mean = jnp.mean(t, axis=-1, keepdims=True)
        var = jnp.mean((t - mean) ** 2, axis=-1, keepdims=True)
        tn_ = ((t - mean) * lax.rsqrt(var + eps)) * g + be        # LayerNorm1(token)
        acc = acc + jnp.dot(tn_.astype(compute_dtype),
                            w_ref[j * C:(j + 1) * C, :].astype(compute_dtype),
                            preferred_element_type=jnp.float32)
    o_ref[...] = (acc + b_ref[...].astype(jnp.float32)).astype(o_ref.dtype)


def sr_ln_conv(xs, gamma, beta, w_flat, bias, *, C, eps=1e-5,
               compute_dtype=jnp.float32, out_dtype=None, tm=256):
    """xs: (M, R*R*C) patch-flattened raw tokens in (r1, r2, ci) order."""
    M, Kf = xs.shape
    nchunks = Kf // C
    out_dtype = xs.dtype if out_dtype is None else out_dtype
    tm = _tile_sub(M, tm)
    return pl.pallas_call(
        functools.partial(_sr_ln_conv_kernel, C=C, nchunks=nchunks, eps=eps,
                          compute_dtype=compute_dtype),
        out_shape=jax.ShapeDtypeStruct((M, C), out_dtype),
        grid=(M // tm,),
        in_specs=[pl.BlockSpec((tm, Kf), lambda i: (i, 0)),
                  pl.BlockSpec((1, C), lambda i: (0, 0)),
                  pl.BlockSpec((1, C), lambda i: (0, 0)),
                  pl.BlockSpec((Kf, C), lambda i: (0, 0)),
                  pl.BlockSpec((1, C), lambda i: (0, 0))],
        out_specs=pl.BlockSpec((tm, C), lambda i: (i, 0)),
        compiler_params=pltpu.CompilerParams(dimension_semantics=("parallel",)),
    )(xs, gamma.reshape(1, C), beta.reshape(1, C), w_flat, bias.reshape(1, C))


# --------------------------- flash-style attention --------------------------- #

def _flash_attn_kernel(q_ref, kv_ref, o_ref, m_sc, l_sc, acc_sc, *,
                       num_heads, dh, C, scale, compute_dtype, recip_approx):
    kvi = pl.program_id(2)

    @pl.when(kvi == 0)
    def _():
        m_sc[...] = jnp.full_like(m_sc, -jnp.inf)
        l_sc[...] = jnp.zeros_like(l_sc)
        acc_sc[...] = jnp.zeros_like(acc_sc)

    q = q_ref[0]            # (tq, C), heads concatenated on the lane axis
    kv = kv_ref[0]          # (tk, 2C): [K heads | V heads]
    for h in range(num_heads):
        qh = q[:, h * dh:(h + 1) * dh].astype(compute_dtype)
        kh = kv[:, h * dh:(h + 1) * dh].astype(compute_dtype)
        vh = kv[:, C + h * dh:C + (h + 1) * dh].astype(compute_dtype)
        s = lax.dot_general(qh, kh, (((1,), (1,)), ((), ())),
                            preferred_element_type=jnp.float32) * scale   # (tq, tk)
        m_prev = m_sc[h]
        m_new = jnp.maximum(m_prev, jnp.max(s, axis=-1, keepdims=True))
        alpha = jnp.exp(m_prev - m_new)
        p = jnp.exp(s - m_new)
        l_sc[h] = alpha * l_sc[h] + jnp.sum(p, axis=-1, keepdims=True)
        acc_sc[h] = alpha * acc_sc[h] + lax.dot_general(
            p.astype(compute_dtype), vh, (((1,), (0,)), ((), ())),
            preferred_element_type=jnp.float32)
        m_sc[h] = m_new

    @pl.when(kvi == pl.num_programs(2) - 1)
    def _():
        outs = [acc_sc[h] * pl.reciprocal(l_sc[h], approx=recip_approx)
                for h in range(num_heads)]
        o_ref[0] = jnp.concatenate(outs, axis=-1).astype(o_ref.dtype)  # lane-dense store


def flash_attention(q, kv, num_heads, scale, *, compute_dtype=jnp.float32,
                    out_dtype=None, tq=128, tk=256):
    """q: (B, N, C); kv: (B, Nr, 2C) -> (B, N, C), heads kept concatenated."""
    B, N, C = q.shape
    _, Nr, _ = kv.shape
    dh = C // num_heads
    out_dtype = q.dtype if out_dtype is None else out_dtype
    tq = _tile_sub(N, tq)
    tk = _tile_sub(Nr, tk)
    cost = pl.CostEstimate(
        flops=int(4 * B * N * Nr * C),
        transcendentals=int(B * num_heads * N * Nr),
        bytes_accessed=int(q.size * q.dtype.itemsize + kv.size * kv.dtype.itemsize
                           + B * N * C * jnp.dtype(out_dtype).itemsize))
    return pl.pallas_call(
        functools.partial(_flash_attn_kernel, num_heads=num_heads, dh=dh, C=C,
                          scale=scale, compute_dtype=compute_dtype,
                          recip_approx=_is_bf16(compute_dtype)),
        out_shape=jax.ShapeDtypeStruct((B, N, C), out_dtype),
        grid=(B, N // tq, Nr // tk),
        in_specs=[pl.BlockSpec((1, tq, C), lambda b, qi, ki: (b, qi, 0)),
                  pl.BlockSpec((1, tk, 2 * C), lambda b, qi, ki: (b, ki, 0))],
        out_specs=pl.BlockSpec((1, tq, C), lambda b, qi, ki: (b, qi, 0)),
        scratch_shapes=[pltpu.VMEM((num_heads, tq, 1), jnp.float32),
                        pltpu.VMEM((num_heads, tq, 1), jnp.float32),
                        pltpu.VMEM((num_heads, tq, dh), jnp.float32)],
        compiler_params=pltpu.CompilerParams(
            dimension_semantics=("parallel", "parallel", "arbitrary")),
        cost_estimate=cost,
    )(q, kv)


# -------------------- depthwise 3x3 conv + GELU (MixFFN) --------------------- #

def _dwconv_gelu_kernel(x_ref, w_ref, b_ref, o_ref, *, H, W):
    tc = o_ref.shape[-1]
    x = x_ref[0].astype(jnp.float32)                    # (H, W, tc)
    w = w_ref[...].astype(jnp.float32)                  # (3, 3, tc)
    zrow = jnp.zeros((1, W, tc), jnp.float32)
    zcol = jnp.zeros((H, 1, tc), jnp.float32)

    def shift_h(v, dy):          # out[y] = v[y + dy], zero outside
        if dy == -1:
            return jnp.concatenate([zrow, v[:H - 1]], axis=0)
        if dy == 1:
            return jnp.concatenate([v[1:], zrow], axis=0)
        return v

    def shift_w(v, dx):          # out[:, x] = v[:, x + dx], zero outside
        if dx == -1:
            return jnp.concatenate([zcol, v[:, :W - 1]], axis=1)
        if dx == 1:
            return jnp.concatenate([v[:, 1:], zcol], axis=1)
        return v

    acc = jnp.zeros((H, W, tc), jnp.float32)
    for r1 in range(3):
        xh = shift_h(x, r1 - 1)
        for r2 in range(3):
            acc = acc + shift_w(xh, r2 - 1) * w[r1, r2]
    acc = acc + b_ref[...].astype(jnp.float32)
    y = 0.5 * acc * (1.0 + lax.erf(acc * 0.7071067811865476))   # exact GELU
    o_ref[0] = y.astype(o_ref.dtype)


def dwconv_gelu(x, w, bias, *, out_dtype=None, tc=128):
    """3x3 depthwise conv (pad=1, groups=C) fused with exact GELU.  x: (B,H,W,C)."""
    # TODO(synk): for very large H*W additionally tile rows with halo DMA.
    B, H, W, C = x.shape
    out_dtype = x.dtype if out_dtype is None else out_dtype
    tc = _tile_lane(C, tc)
    return pl.pallas_call(
        functools.partial(_dwconv_gelu_kernel, H=H, W=W),
        out_shape=jax.ShapeDtypeStruct((B, H, W, C), out_dtype),
        grid=(B, C // tc),
        in_specs=[pl.BlockSpec((1, H, W, tc), lambda b, c: (b, 0, 0, c)),
                  pl.BlockSpec((3, 3, tc), lambda b, c: (0, 0, c)),
                  pl.BlockSpec((1, tc), lambda b, c: (0, c))],
        out_specs=pl.BlockSpec((1, H, W, tc), lambda b, c: (b, 0, 0, c)),
        compiler_params=pltpu.CompilerParams(
            dimension_semantics=("parallel", "parallel")),
    )(x, w, bias.reshape(1, C))


# -------------------------- TransformerBlock forward ------------------------- #

def transformer_block(x, p, H, W, num_heads, reduction_ratio, *,
                      compute_dtype=jnp.float32):
    """x: (B, N, C) with N == H * W.  Returns (B, N, C)."""
    B, N, C = x.shape
    assert N == H * W
    dh = C // num_heads
    scale = float(dh) ** -0.5
    R = reduction_ratio
    io_dtype = x.dtype
    act_dtype = jnp.bfloat16 if _is_bf16(compute_dtype) else io_dtype

    x_flat = x.reshape(B * N, C)

    # ---- attention branch: x = x + proj(attn(LN1(x))) -------------------- #
    q = fused_ln_matmul(x_flat, p["ln1_g"], p["ln1_b"], p["wq"], None,
                        compute_dtype=compute_dtype, out_dtype=act_dtype)
    q = q.reshape(B, N, C)

    if R > 1:
        Hr, Wr = H // R, W // R
        Nr = Hr * Wr
        # TODO(synk): fold this patch-flatten into the SR kernel's index_map.
        xs = x.reshape(B, Hr, R, Wr, R, C).transpose(0, 1, 3, 2, 4, 5)
        xs = xs.reshape(B * Nr, R * R * C)                 # (r1, r2, ci) order
        w_sr_flat = p["w_sr"].transpose(2, 3, 1, 0).reshape(R * R * C, C)
        xr = sr_ln_conv(xs, p["ln1_g"], p["ln1_b"], w_sr_flat, p["b_sr"], C=C,
                        compute_dtype=compute_dtype, out_dtype=act_dtype)
        kv = fused_ln_matmul(xr, p["ln_sr_g"], p["ln_sr_b"], p["wkv"], None,
                             compute_dtype=compute_dtype, out_dtype=act_dtype)
    else:
        Nr = N
        kv = fused_ln_matmul(x_flat, p["ln1_g"], p["ln1_b"], p["wkv"], None,
                             compute_dtype=compute_dtype, out_dtype=act_dtype)
    kv = kv.reshape(B, Nr, 2 * C)

    o = flash_attention(q, kv, num_heads, scale,
                        compute_dtype=compute_dtype, out_dtype=act_dtype)
    x1 = tiled_matmul(o.reshape(B * N, C), p["w_proj"], p["b_proj"],
                      residual=x_flat, compute_dtype=compute_dtype,
                      out_dtype=io_dtype)                   # fused residual add

    # ---- MixFFN branch: x = x + fc2(gelu(dwconv(fc1(LN2(x))))) ----------- #
    hidden = p["w_fc1"].shape[1]
    h1 = fused_ln_matmul(x1, p["ln2_g"], p["ln2_b"], p["w_fc1"], p["b_fc1"],
                         compute_dtype=compute_dtype, out_dtype=act_dtype)
    h2 = dwconv_gelu(h1.reshape(B, H, W, hidden), p["w_dw"], p["b_dw"],
                     out_dtype=act_dtype)
    out = tiled_matmul(h2.reshape(B * N, hidden), p["w_fc2"], p["b_fc2"],
                       residual=x1, compute_dtype=compute_dtype,
                       out_dtype=io_dtype)                  # fused residual add
    return out.reshape(B, N, C)


# ------------------------------ pure-JAX reference --------------------------- #

def _ln_ref(x, g, b, eps=1e-5):
    m = jnp.mean(x, -1, keepdims=True)
    v = jnp.mean((x - m) ** 2, -1, keepdims=True)
    return (x - m) / jnp.sqrt(v + eps) * g + b


def reference_block(x, p, H, W, num_heads, R):
    B, N, C = x.shape
    dh = C // num_heads
    scale = float(dh) ** -0.5
    x1 = _ln_ref(x, p["ln1_g"], p["ln1_b"])
    q = (x1 @ p["wq"]).reshape(B, N, num_heads, dh).transpose(0, 2, 1, 3)
    if R > 1:
        Hr, Wr = H // R, W // R
        xs = x1.reshape(B, H, W, C).reshape(B, Hr, R, Wr, R, C)
        xs = xs.transpose(0, 1, 3, 5, 2, 4).reshape(B, Hr * Wr, C * R * R)
        xr = xs @ p["w_sr"].reshape(C, C * R * R).T + p["b_sr"]
        xr = _ln_ref(xr, p["ln_sr_g"], p["ln_sr_b"])
        Nr = Hr * Wr
    else:
        xr = x1
        Nr = N
    kv = (xr @ p["wkv"]).reshape(B, Nr, 2, num_heads, dh).transpose(2, 0, 3, 1, 4)
    k, v = kv[0], kv[1]
    s = jnp.einsum("bhnd,bhmd->bhnm", q, k) * scale
    a = jax.nn.softmax(s, axis=-1)
    o = jnp.einsum("bhnm,bhmd->bhnd", a, v).transpose(0, 2, 1, 3).reshape(B, N, C)
    x = x + (o @ p["w_proj"] + p["b_proj"])
    x2 = _ln_ref(x, p["ln2_g"], p["ln2_b"])
    h = (x2 @ p["w_fc1"] + p["b_fc1"]).reshape(B, H, W, -1)
    hp = jnp.pad(h, ((0, 0), (1, 1), (1, 1), (0, 0)))
    acc = jnp.zeros_like(h)
    for r1 in range(3):
        for r2 in range(3):
            acc = acc + hp[:, r1:r1 + H, r2:r2 + W, :] * p["w_dw"][r1, r2]
    acc = acc + p["b_dw"]
    g = 0.5 * acc * (1.0 + jax.lax.erf(acc * 0.7071067811865476))
    g = g.reshape(B, N, -1)
    return x + (g @ p["w_fc2"] + p["b_fc2"])


# ------------------------------------ main ----------------------------------- #

if __name__ == "__main__":
    B, H, W = 2, 8, 8
    d_model, num_heads, mlp_ratio, R = 32, 2, 4, 2
    N = H * W
    hidden = d_model * mlp_ratio

    key = jax.random.PRNGKey(0)
    ks = jax.random.split(key, 20)
    f32 = jnp.float32

    params = {
        "ln1_g": 1.0 + 0.1 * jax.random.normal(ks[0], (d_model,), f32),
        "ln1_b": 0.1 * jax.random.normal(ks[1], (d_model,), f32),
        "wq": 0.05 * jax.random.normal(ks[2], (d_model, d_model), f32),
        "wkv": 0.05 * jax.random.normal(ks[3], (d_model, 2 * d_model), f32),
        # Conv2d(d_model, d_model, kernel=R, stride=R) weight in torch (Co,Ci,R,R)
        "w_sr": 0.05 * jax.random.normal(ks[4], (d_model, d_model, R, R), f32),
        "b_sr": 0.05 * jax.random.normal(ks[5], (d_model,), f32),
        "ln_sr_g": 1.0 + 0.1 * jax.random.normal(ks[6], (d_model,), f32),
        "ln_sr_b": 0.1 * jax.random.normal(ks[7], (d_model,), f32),
        "w_proj": 0.05 * jax.random.normal(ks[8], (d_model, d_model), f32),
        "b_proj": 0.05 * jax.random.normal(ks[9], (d_model,), f32),
        "ln2_g": 1.0 + 0.1 * jax.random.normal(ks[10], (d_model,), f32),
        "ln2_b": 0.1 * jax.random.normal(ks[11], (d_model,), f32),
        "w_fc1": 0.05 * jax.random.normal(ks[12], (d_model, hidden), f32),
        "b_fc1": 0.05 * jax.random.normal(ks[13], (hidden,), f32),
        # depthwise 3x3 weights stored as (kh, kw, C)  (torch: (C,1,3,3))
        "w_dw": 0.05 * jax.random.normal(ks[14], (3, 3, hidden), f32),
        "b_dw": 0.05 * jax.random.normal(ks[15], (hidden,), f32),
        "w_fc2": 0.05 * jax.random.normal(ks[16], (hidden, d_model), f32),
        "b_fc2": 0.05 * jax.random.normal(ks[17], (d_model,), f32),
    }
    x = jax.random.normal(ks[18], (B, N, d_model), f32)

    ref = reference_block(x, params, H, W, num_heads, R)

    # exact (f32 MXU) path: tight check against the reference
    out = transformer_block(x, params, H, W, num_heads, R,
                            compute_dtype=jnp.float32)
    out = jax.block_until_ready(out)
    assert out.shape == (B, N, d_model)
    err = float(jnp.max(jnp.abs(out - ref)))
    assert jnp.allclose(out, ref, rtol=1e-4, atol=1e-4), f"f32 max abs err {err}"

    # bf16-MXU path (f32 accumulation / LN / softmax / GELU): loose check
    out_bf = transformer_block(x, params, H, W, num_heads, R,
                               compute_dtype=jnp.bfloat16)
    out_bf = jax.block_until_ready(out_bf)
    err_bf = float(jnp.max(jnp.abs(out_bf.astype(jnp.float32) - ref)))
    assert err_bf < 0.1, f"bf16 max abs err {err_bf}"

    print("KERNEL_OK")
</pallas_src>

<mosaic_0001>
module attributes {stable_mosaic.version = 11 : i64} {
  func.func @_ln_matmul_kernel(%arg0: i32, %arg1: i32, %arg2: memref<128x32xf32, #tpu.memory_space<vmem>>, %arg3: memref<1x32xf32, #tpu.memory_space<vmem>>, %arg4: memref<1x32xf32, #tpu.memory_space<vmem>>, %arg5: memref<32x32xf32, #tpu.memory_space<vmem>>, %arg6: memref<1x32xf32, #tpu.memory_space<vmem>>, %arg7: memref<128x32xf32, #tpu.memory_space<vmem>>) attributes {dimension_semantics = [#tpu.dimension_semantics<parallel>, #tpu.dimension_semantics<parallel>], iteration_bounds = array<i64: 1, 1>, scalar_prefetch = 0 : i64, scratch_operands = 0 : i64, tpu.core_type = #tpu.core_type<tc>, window_params = [{transform_indices = @transform_0, window_bounds = array<i64: 128, 32>}, {pipeline_mode = #tpu.pipeline_mode<synchronous>, transform_indices = @transform_1, window_bounds = array<i64: 1, 32>}, {pipeline_mode = #tpu.pipeline_mode<synchronous>, transform_indices = @transform_2, window_bounds = array<i64: 1, 32>}, {transform_indices = @transform_3, window_bounds = array<i64: 32, 32>}, {transform_indices = @transform_4, window_bounds = array<i64: 1, 32>}, {transform_indices = @transform_5, window_bounds = array<i64: 128, 32>}]} {
    %c0 = arith.constant 0 : index
    %c0_0 = arith.constant 0 : index
    %0 = vector.load %arg2[%c0, %c0_0] : memref<128x32xf32, #tpu.memory_space<vmem>>, vector<128x32xf32>
    %cst = arith.constant dense<0.000000e+00> : vector<128xf32>
    %1 = vector.multi_reduction <add>, %0, %cst [1] : vector<128x32xf32> to vector<128xf32>
    %2 = vector.shape_cast %1 : vector<128xf32> to vector<128x1xf32>
    %cst_1 = arith.constant 3.200000e+01 : f32
    %3 = vector.broadcast %cst_1 : f32 to vector<128x1xf32>
    %4 = arith.divf %2, %3 : vector<128x1xf32>
    %5 = vector.broadcast %4 : vector<128x1xf32> to vector<128x32xf32>
    %6 = arith.subf %0, %5 : vector<128x32xf32>
    %7 = arith.mulf %6, %6 : vector<128x32xf32>
    %cst_2 = arith.constant dense<0.000000e+00> : vector<128xf32>
    %8 = vector.multi_reduction <add>, %7, %cst_2 [1] : vector<128x32xf32> to vector<128xf32>
    %9 = vector.shape_cast %8 : vector<128xf32> to vector<128x1xf32>
    %cst_3 = arith.constant 3.200000e+01 : f32
    %10 = vector.broadcast %cst_3 : f32 to vector<128x1xf32>
    %11 = arith.divf %9, %10 : vector<128x1xf32>
    %12 = vector.broadcast %4 : vector<128x1xf32> to vector<128x32xf32>
    %13 = arith.subf %0, %12 : vector<128x32xf32>
    %cst_4 = arith.constant 9.99999974E-6 : f32
    %14 = vector.broadcast %cst_4 : f32 to vector<128x1xf32>
    %15 = arith.addf %11, %14 : vector<128x1xf32>
    %16 = math.rsqrt %15 : vector<128x1xf32>
    %17 = vector.broadcast %16 : vector<128x1xf32> to vector<128x32xf32>
    %18 = arith.mulf %13, %17 : vector<128x32xf32>
    %c0_5 = arith.constant 0 : index
    %c0_6 = arith.constant 0 : index
    %19 = vector.load %arg3[%c0_5, %c0_6] : memref<1x32xf32, #tpu.memory_space<vmem>>, vector<1x32xf32>
    %20 = vector.broadcast %19 : vector<1x32xf32> to vector<128x32xf32>
    %21 = arith.mulf %18, %20 : vector<128x32xf32>
    %c0_7 = arith.constant 0 : index
    %c0_8 = arith.constant 0 : index
    %22 = vector.load %arg4[%c0_7, %c0_8] : memref<1x32xf32, #tpu.memory_space<vmem>>, vector<1x32xf32>
    %23 = vector.broadcast %22 : vector<1x32xf32> to vector<128x32xf32>
    %24 = arith.addf %21, %23 : vector<128x32xf32>
    %c0_9 = arith.constant 0 : index
    %c0_10 = arith.constant 0 : index
    %25 = vector.load %arg5[%c0_9, %c0_10] : memref<32x32xf32, #tpu.memory_space<vmem>>, vector<32x32xf32>
    %cst_11 = arith.constant dense<0.000000e+00> : vector<128x32xf32>
    %26 = tpu.matmul %24, %25, %cst_11 {dimension_numbers = #tpu.dot_dimension_numbers<[1], [0], [0], [1], [0, 0, 1, 1], [], []>} : vector<128x32xf32>, vector<32x32xf32>, vector<128x32xf32> -> vector<128x32xf32>
    %c0_12 = arith.constant 0 : index
    %c0_13 = arith.constant 0 : index
    %27 = vector.load %arg6[%c0_12, %c0_13] : memref<1x32xf32, #tpu.memory_space<vmem>>, vector<1x32xf32>
    %28 = vector.broadcast %27 : vector<1x32xf32> to vector<128x32xf32>
    %29 = arith.addf %26, %28 : vector<128x32xf32>
    %c0_14 = arith.constant 0 : index
    %c0_15 = arith.constant 0 : index
    %30 = vector.load %arg7[%c0_14, %c0_15] : memref<128x32xf32, #tpu.memory_space<vmem>>, vector<128x32xf32>
    tpu.vector_store %arg7[%c0_14, %c0_15], %29 {strides = array<i32>} : memref<128x32xf32, #tpu.memory_space<vmem>>, vector<128x32xf32>,
    return
  }
  func.func @transform_0(%arg0: i32, %arg1: i32) -> (i32, i32) {
    %c0_i32 = arith.constant 0 : i32
    %c0_i32_0 = arith.constant 0 : i32
    return %arg0, %c0_i32 : i32, i32
  }
  func.func @transform_1(%arg0: i32, %arg1: i32) -> (i32, i32) {
    %c0_i32 = arith.constant 0 : i32
    %c0_i32_0 = arith.constant 0 : i32
    %c0_i32_1 = arith.constant 0 : i32
    return %c0_i32, %c0_i32_0 : i32, i32
  }
  func.func @transform_2(%arg0: i32, %arg1: i32) -> (i32, i32) {
    %c0_i32 = arith.constant 0 : i32
    %c0_i32_0 = arith.constant 0 : i32
    %c0_i32_1 = arith.constant 0 : i32
    return %c0_i32, %c0_i32_0 : i32, i32
  }
  func.func @transform_3(%arg0: i32, %arg1: i32) -> (i32, i32) {
    %c0_i32 = arith.constant 0 : i32
    %c0_i32_0 = arith.constant 0 : i32
    return %c0_i32, %arg1 : i32, i32
  }
  func.func @transform_4(%arg0: i32, %arg1: i32) -> (i32, i32) {
    %c0_i32 = arith.constant 0 : i32
    %c0_i32_0 = arith.constant 0 : i32
    return %c0_i32, %arg1 : i32, i32
  }
  func.func @transform_5(%arg0: i32, %arg1: i32) -> (i32, i32) {
    %c0_i32 = arith.constant 0 : i32
    return %arg0, %arg1 : i32, i32
  }
}

</mosaic_0001>

<llo_original>
// kernel: tpu_custom_call.1
$region0: #{tpu_custom_call.1}
  #allocation0 [shape = 'u32[]', space=smem, size = 0x4, offset = 0x4, fixed_abs, tag = 'smem constant byte address 0x4 - core index']
  #allocation1 [shape = 'u32[72,128]{1,0:T(1,128)}', space=vmem, size = 0x9000, scoped, tag = 'internal scratch']
  %s0 = inlined_call_operand.vmem [shape: f32[128,32], index: 0, kind: input, shape index: {}]
  %s1 = inlined_call_operand.vmem [shape: f32[1,32], index: 1, kind: input, shape index: {}]
  %s2 = inlined_call_operand.vmem [shape: f32[1,32], index: 2, kind: input, shape index: {}]
  %s3 = inlined_call_operand.vmem [shape: f32[32,32], index: 3, kind: input, shape index: {}]
  %s4 = inlined_call_operand.vmem [shape: f32[1,32], index: 4, kind: input, shape index: {}]
  %s5 = inlined_call_operand.vmem [shape: f32[128,32], index: 5, kind: output, shape index: {}]
  %s6 = sld [smem:[#allocation0]]
  $region30: #{tpu_custom_call.1} parent=0
    _
  %s8 = ssub.s32 1, %s6
  %s9 = scalar_select 0, %s8, %s6
  // Predicated region
  $region2: #{tpu_custom_call.1} parent=0 // pred_check
    _
  $region3: #{tpu_custom_call.1} parent=0 // pred_check_branch
    %11 = sbr.rel (0) target = $region5
  $region4: #{tpu_custom_call.1} parent=0 // pred_region
    _
  $region5: #{tpu_custom_call.1} parent=0 // pred_fallthru
    _
  // Predicated region
  $region6: #{tpu_custom_call.1} parent=0 // pred_check
    _
  $region7: #{tpu_custom_call.1} parent=0 // pred_check_branch
    %13 = sbr.rel (0) target = $region9
  $region8: #{tpu_custom_call.1} parent=0 // pred_region
    _
  $region9: #{tpu_custom_call.1} parent=0 // pred_fallthru
    _
  // Predicated region
  $region10: #{tpu_custom_call.1} parent=0 // pred_check
    _
  $region11: #{tpu_custom_call.1} parent=0 // pred_check_branch
    %15 = sbr.rel (0) target = $region13
  $region12: #{tpu_custom_call.1} parent=0 // pred_region
    _
  $region13: #{tpu_custom_call.1} parent=0 // pred_fallthru
    _
  // Predicated region
  $region14: #{tpu_custom_call.1} parent=0 // pred_check
    _
  $region15: #{tpu_custom_call.1} parent=0 // pred_check_branch
    %17 = sbr.rel (0) target = $region17
  $region16: #{tpu_custom_call.1} parent=0 // pred_region
    _
  $region17: #{tpu_custom_call.1} parent=0 // pred_fallthru
    _
  // Predicated region
  $region18: #{tpu_custom_call.1} parent=0 // pred_check
    _
  $region19: #{tpu_custom_call.1} parent=0 // pred_check_branch
    %19 = sbr.rel (0) target = $region21
  $region20: #{tpu_custom_call.1} parent=0 // pred_region
    _
  $region21: #{tpu_custom_call.1} parent=0 // pred_fallthru
    _
  %v20 = vld [vmem:[%s0] sm:$0xff]
  %v21 = vld [vmem:[%s0 + $0x8] sm:$0xff]
  %v22 = vld [vmem:[%s0 + $0x10] sm:$0xff]
  %v23 = vld [vmem:[%s0 + $0x18] sm:$0xff]
  %v24 = vld [vmem:[%s0 + $0x20] sm:$0xff]
  %v25 = vld [vmem:[%s0 + $0x28] sm:$0xff]
  %v26 = vld [vmem:[%s0 + $0x30] sm:$0xff]
  %v27 = vld [vmem:[%s0 + $0x38] sm:$0xff]
  %v28 = vld [vmem:[%s0 + $0x40] sm:$0xff]
  %v29 = vld [vmem:[%s0 + $0x48] sm:$0xff]
  %v30 = vld [vmem:[%s0 + $0x50] sm:$0xff]
  %v31 = vld [vmem:[%s0 + $0x58] sm:$0xff]
  %v32 = vld [vmem:[%s0 + $0x60] sm:$0xff]
  %v33 = vld [vmem:[%s0 + $0x68] sm:$0xff]
  %v34 = vld [vmem:[%s0 + $0x70] sm:$0xff]
  %v35 = vld [vmem:[%s0 + $0x78] sm:$0xff]
  %vm36 = vcmask 261120
  %v37 = vsel %vm36, %v20, 0.0
  %38 = vadd.xlane.f32.xlu0 %v37
  %v39 = vpop.xlane.xlu0 %38
  %v40 = vsel %vm36, %v21, 0.0
  %41 = vadd.xlane.f32.xlu0 %v40
  %v42 = vpop.xlane.xlu0 %41
  %v43 = vsel %vm36, %v22, 0.0
  %44 = vadd.xlane.f32.xlu0 %v43
  %v45 = vpop.xlane.xlu0 %44
  %v46 = vsel %vm36, %v23, 0.0
  %47 = vadd.xlane.f32.xlu0 %v46
  %v48 = vpop.xlane.xlu0 %47
  %v49 = vsel %vm36, %v24, 0.0
  %50 = vadd.xlane.f32.xlu0 %v49
  %v51 = vpop.xlane.xlu0 %50
  %v52 = vsel %vm36, %v25, 0.0
  %53 = vadd.xlane.f32.xlu0 %v52
  %v54 = vpop.xlane.xlu0 %53
  %v55 = vsel %vm36, %v26, 0.0
  %56 = vadd.xlane.f32.xlu0 %v55
  %v57 = vpop.xlane.xlu0 %56
  %v58 = vsel %vm36, %v27, 0.0
  %59 = vadd.xlane.f32.xlu0 %v58
  %v60 = vpop.xlane.xlu0 %59
  %v61 = vsel %vm36, %v28, 0.0
  %62 = vadd.xlane.f32.xlu0 %v61
  %v63 = vpop.xlane.xlu0 %62
  %v64 = vsel %vm36, %v29, 0.0
  %65 = vadd.xlane.f32.xlu0 %v64
  %v66 = vpop.xlane.xlu0 %65
  %v67 = vsel %vm36, %v30, 0.0
  %68 = vadd.xlane.f32.xlu0 %v67
  %v69 = vpop.xlane.xlu0 %68
  %v70 = vsel %vm36, %v31, 0.0
  %71 = vadd.xlane.f32.xlu0 %v70
  %v72 = vpop.xlane.xlu0 %71
  %v73 = vsel %vm36, %v32, 0.0
  %74 = vadd.xlane.f32.xlu0 %v73
  %v75 = vpop.xlane.xlu0 %74
  %v76 = vsel %vm36, %v33, 0.0
  %77 = vadd.xlane.f32.xlu0 %v76
  %v78 = vpop.xlane.xlu0 %77
  %v79 = vsel %vm36, %v34, 0.0
  %80 = vadd.xlane.f32.xlu0 %v79
  %v81 = vpop.xlane.xlu0 %80
  %v82 = vsel %vm36, %v35, 0.0
  %83 = vadd.xlane.f32.xlu0 %v82
  %v84 = vpop.xlane.xlu0 %83
  %v85 = vrcp.pop 32.0
  %v86 = vmul.f32 32.0, %v85
  %v87 = vsub.f32 1.0, %v86
  %v88 = vmul.f32 %v85, %v87
  %v89 = vadd.f32 %v85, %v88
  %vm90 = vweird.f32 %v85
  %v91 = vsel %vm90, %v85, %v89
  %v92 = vmul.f32 %v39, %v91
  %v93 = vmul.f32 %v42, %v91
  %v94 = vmul.f32 %v45, %v91
  %v95 = vmul.f32 %v48, %v91
  %v96 = vmul.f32 %v51, %v91
  %v97 = vmul.f32 %v54, %v91
  %v98 = vmul.f32 %v57, %v91
  %v99 = vmul.f32 %v60, %v91
  %v100 = vmul.f32 %v63, %v91
  %v101 = vmul.f32 %v66, %v91
  %v102 = vmul.f32 %v69, %v91
  %v103 = vmul.f32 %v72, %v91
  %v104 = vmul.f32 %v75, %v91
  %v105 = vmul.f32 %v78, %v91
  %v106 = vmul.f32 %v81, %v91
  %v107 = vmul.f32 %v84, %v91
  %v108 = vsub.f32 %v20, %v92
  %v109 = vsub.f32 %v21, %v93
  %v110 = vsub.f32 %v22, %v94
  %v111 = vsub.f32 %v23, %v95
  %v112 = vsub.f32 %v24, %v96
  %v113 = vsub.f32 %v25, %v97
  %v114 = vsub.f32 %v26, %v98
  %v115 = vsub.f32 %v27, %v99
  %v116 = vsub.f32 %v28, %v100
  %v117 = vsub.f32 %v29, %v101
  %v118 = vsub.f32 %v30, %v102
  %v119 = vsub.f32 %v31, %v103
  %v120 = vsub.f32 %v32, %v104
  %v121 = vsub.f32 %v33, %v105
  %v122 = vsub.f32 %v34, %v106
  %v123 = vsub.f32 %v35, %v107
  %v124 = vmul.f32 %v108, %v108
  %v125 = vmul.f32 %v109, %v109
  %v126 = vmul.f32 %v110, %v110
  %v127 = vmul.f32 %v111, %v111
  %v128 = vmul.f32 %v112, %v112
  %v129 = vmul.f32 %v113, %v113
  %v130 = vmul.f32 %v114, %v114
  %v131 = vmul.f32 %v115, %v115
  %v132 = vmul.f32 %v116, %v116
  %v133 = vmul.f32 %v117, %v117
  %v134 = vmul.f32 %v118, %v118
  %v135 = vmul.f32 %v119, %v119
  %v136 = vmul.f32 %v120, %v120
  %v137 = vmul.f32 %v121, %v121
  %v138 = vmul.f32 %v122, %v122
  %v139 = vmul.f32 %v123, %v123
  %v140 = vsel %vm36, %v124, 0.0
  %141 = vadd.xlane.f32.xlu0 %v140
  %v142 = vpop.xlane.xlu0 %141
  %v143 = vsel %vm36, %v125, 0.0
  %144 = vadd.xlane.f32.xlu0 %v143
  %v145 = vpop.xlane.xlu0 %144
  %v146 = vsel %vm36, %v126, 0.0
  %147 = vadd.xlane.f32.xlu0 %v146
  %v148 = vpop.xlane.xlu0 %147
  %v149 = vsel %vm36, %v127, 0.0
  %150 = vadd.xlane.f32.xlu0 %v149
  %v151 = vpop.xlane.xlu0 %150
  %v152 = vsel %vm36, %v128, 0.0
  %153 = vadd.xlane.f32.xlu0 %v152
  %v154 = vpop.xlane.xlu0 %153
  %v155 = vsel %vm36, %v129, 0.0
  %156 = vadd.xlane.f32.xlu0 %v155
  %v157 = vpop.xlane.xlu0 %156
  %v158 = vsel %vm36, %v130, 0.0
  %159 = vadd.xlane.f32.xlu0 %v158
  %v160 = vpop.xlane.xlu0 %159
  %v161 = vsel %vm36, %v131, 0.0
  %162 = vadd.xlane.f32.xlu0 %v161
  %v163 = vpop.xlane.xlu0 %162
  %v164 = vsel %vm36, %v132, 0.0
  %165 = vadd.xlane.f32.xlu0 %v164
  %v166 = vpop.xlane.xlu0 %165
  %v167 = vsel %vm36, %v133, 0.0
  %168 = vadd.xlane.f32.xlu0 %v167
  %v169 = vpop.xlane.xlu0 %168
  %v170 = vsel %vm36, %v134, 0.0
  %171 = vadd.xlane.f32.xlu0 %v170
  %v172 = vpop.xlane.xlu0 %171
  %v173 = vsel %vm36, %v135, 0.0
  %174 = vadd.xlane.f32.xlu0 %v173
  %v175 = vpop.xlane.xlu0 %174
  %v176 = vsel %vm36, %v136, 0.0
  %177 = vadd.xlane.f32.xlu0 %v176
  %v178 = vpop.xlane.xlu0 %177
  %v179 = vsel %vm36, %v137, 0.0
  %180 = vadd.xlane.f32.xlu0 %v179
  %v181 = vpop.xlane.xlu0 %180
  %v182 = vsel %vm36, %v138, 0.0
  %183 = vadd.xlane.f32.xlu0 %v182
  %v184 = vpop.xlane.xlu0 %183
  %v185 = vsel %vm36, %v139, 0.0
  %186 = vadd.xlane.f32.xlu0 %v185
  %v187 = vpop.xlane.xlu0 %186
  %v188 = vmul.f32 %v142, %v91
  %v189 = vmul.f32 %v145, %v91
  %v190 = vmul.f32 %v148, %v91
  %v191 = vmul.f32 %v151, %v91
  %v192 = vmul.f32 %v154, %v91
  %v193 = vmul.f32 %v157, %v91
  %v194 = vmul.f32 %v160, %v91
  %v195 = vmul.f32 %v163, %v91
  %v196 = vmul.f32 %v166, %v91
  %v197 = vmul.f32 %v169, %v91
  %v198 = vmul.f32 %v172, %v91
  %v199 = vmul.f32 %v175, %v91
  %v200 = vmul.f32 %v178, %v91
  %v201 = vmul.f32 %v181, %v91
  %v202 = vmul.f32 %v184, %v91
  %v203 = vmul.f32 %v187, %v91
  %v204 = vadd.f32 %v188, 1e-05
  %v205 = vadd.f32 %v189, 1e-05
  %v206 = vadd.f32 %v190, 1e-05
  %v207 = vadd.f32 %v191, 1e-05
  %v208 = vadd.f32 %v192, 1e-05
  %v209 = vadd.f32 %v193, 1e-05
  %v210 = vadd.f32 %v194, 1e-05
  %v211 = vadd.f32 %v195, 1e-05
  %v212 = vadd.f32 %v196, 1e-05
  %v213 = vadd.f32 %v197, 1e-05
  %v214 = vadd.f32 %v198, 1e-05
  %v215 = vadd.f32 %v199, 1e-05
  %v216 = vadd.f32 %v200, 1e-05
  %v217 = vadd.f32 %v201, 1e-05
  %v218 = vadd.f32 %v202, 1e-05
  %v219 = vadd.f32 %v203, 1e-05
  %v220 = vrsqrt.pop %v204
  %v221 = vmul.f32 %v220, %v204
  %v222 = vmul.f32 %v221, %v220
  %v223 = vmul.f32 0.5, %v222
  %v224 = vsub.f32 1.5, %v223
  %v225 = vmul.f32 %v220, %v224
  %vm226 = vweird.f32 %v204
  %vm227 = vweird.f32 %v220
  %vm228 = vmor %vm226, %vm227
  %v229 = vsel %vm228, %v220, %v225
  %v230 = vrsqrt.pop %v205
  %v231 = vmul.f32 %v230, %v205
  %v232 = vmul.f32 %v231, %v230
  %v233 = vmul.f32 0.5, %v232
  %v234 = vsub.f32 1.5, %v233
  %v235 = vmul.f32 %v230, %v234
  %vm236 = vweird.f32 %v205
  %vm237 = vweird.f32 %v230
  %vm238 = vmor %vm236, %vm237
  %v239 = vsel %vm238, %v230, %v235
  %v240 = vrsqrt.pop %v206
  %v241 = vmul.f32 %v240, %v206
  %v242 = vmul.f32 %v241, %v240
  %v243 = vmul.f32 0.5, %v242
  %v244 = vsub.f32 1.5, %v243
  %v245 = vmul.f32 %v240, %v244
  %vm246 = vweird.f32 %v206
  %vm247 = vweird.f32 %v240
  %vm248 = vmor %vm246, %vm247
  %v249 = vsel %vm248, %v240, %v245
  %v250 = vrsqrt.pop %v207
  %v251 = vmul.f32 %v250, %v207
  %v252 = vmul.f32 %v251, %v250
  %v253 = vmul.f32 0.5, %v252
  %v254 = vsub.f32 1.5, %v253
  %v255 = vmul.f32 %v250, %v254
  %vm256 = vweird.f32 %v207
  %vm257 = vweird.f32 %v250
  %vm258 = vmor %vm256, %vm257
  %v259 = vsel %vm258, %v250, %v255
  %v260 = vrsqrt.pop %v208
  %v261 = vmul.f32 %v260, %v208
  %v262 = vmul.f32 %v261, %v260
  %v263 = vmul.f32 0.5, %v262
  %v264 = vsub.f32 1.5, %v263
  %v265 = vmul.f32 %v260, %v264
  %vm266 = vweird.f32 %v208
  %vm267 = vweird.f32 %v260
  %vm268 = vmor %vm266, %vm267
  %v269 = vsel %vm268, %v260, %v265
  %v270 = vrsqrt.pop %v209
  %v271 = vmul.f32 %v270, %v209
  %v272 = vmul.f32 %v271, %v270
  %v273 = vmul.f32 0.5, %v272
  %v274 = vsub.f32 1.5, %v273
  %v275 = vmul.f32 %v270, %v274
  %vm276 = vweird.f32 %v209
  %vm277 = vweird.f32 %v270
  %vm278 = vmor %vm276, %vm277
  %v279 = vsel %vm278, %v270, %v275
  %v280 = vrsqrt.pop %v210
  %v281 = vmul.f32 %v280, %v210
  %v282 = vmul.f32 %v281, %v280
  %v283 = vmul.f32 0.5, %v282
  %v284 = vsub.f32 1.5, %v283
  %v285 = vmul.f32 %v280, %v284
  %vm286 = vweird.f32 %v210
  %vm287 = vweird.f32 %v280
  %vm288 = vmor %vm286, %vm287
  %v289 = vsel %vm288, %v280, %v285
  %v290 = vrsqrt.pop %v211
  %v291 = vmul.f32 %v290, %v211
  %v292 = vmul.f32 %v291, %v290
  %v293 = vmul.f32 0.5, %v292
  %v294 = vsub.f32 1.5, %v293
  %v295 = vmul.f32 %v290, %v294
  %vm296 = vweird.f32 %v211
  %vm297 = vweird.f32 %v290
  %vm298 = vmor %vm296, %vm297
  %v299 = vsel %vm298, %v290, %v295
  %v300 = vrsqrt.pop %v212
  %v301 = vmul.f32 %v300, %v212
  %v302 = vmul.f32 %v301, %v300
  %v303 = vmul.f32 0.5, %v302
  %v304 = vsub.f32 1.5, %v303
  %v305 = vmul.f32 %v300, %v304
  %vm306 = vweird.f32 %v212
  %vm307 = vweird.f32 %v300
  %vm308 = vmor %vm306, %vm307
  %v309 = vsel %vm308, %v300, %v305
  %v310 = vrsqrt.pop %v213
  %v311 = vmul.f32 %v310, %v213
  %v312 = vmul.f32 %v311, %v310
  %v313 = vmul.f32 0.5, %v312
  %v314 = vsub.f32 1.5, %v313
  %v315 = vmul.f32 %v310, %v314
  %vm316 = vweird.f32 %v213
  %vm317 = vweird.f32 %v310
  %vm318 = vmor %vm316, %vm317
  %v319 = vsel %vm318, %v310, %v315
  %v320 = vrsqrt.pop %v214
  %v321 = vmul.f32 %v320, %v214
  %v322 = vmul.f32 %v321, %v320
  %v323 = vmul.f32 0.5, %v322
  %v324 = vsub.f32 1.5, %v323
  %v325 = vmul.f32 %v320, %v324
  %vm326 = vweird.f32 %v214
  %vm327 = vweird.f32 %v320
  %vm328 = vmor %vm326, %vm327
  %v329 = vsel %vm328, %v320, %v325
  %v330 = vrsqrt.pop %v215
  %v331 = vmul.f32 %v330, %v215
  %v332 = vmul.f32 %v331, %v330
  %v333 = vmul.f32 0.5, %v332
  %v334 = vsub.f32 1.5, %v333
  %v335 = vmul.f32 %v330, %v334
  %vm336 = vweird.f32 %v215
  %vm337 = vweird.f32 %v330
  %vm338 = vmor %vm336, %vm337
  %v339 = vsel %vm338, %v330, %v335
  %v340 = vrsqrt.pop %v216
  %v341 = vmul.f32 %v340, %v216
  %v342 = vmul.f32 %v341, %v340
  %v343 = vmul.f32 0.5, %v342
  %v344 = vsub.f32 1.5, %v343
  %v345 = vmul.f32 %v340, %v344
  %vm346 = vweird.f32 %v216
  %vm347 = vweird.f32 %v340
  %vm348 = vmor %vm346, %vm347
  %v349 = vsel %vm348, %v340, %v345
  %v350 = vrsqrt.pop %v217
  %v351 = vmul.f32 %v350, %v217
  %v352 = vmul.f32 %v351, %v350
  %v353 = vmul.f32 0.5, %v352
  %v354 = vsub.f32 1.5, %v353
  %v355 = vmul.f32 %v350, %v354
  %vm356 = vweird.f32 %v217
  %vm357 = vweird.f32 %v350
  %vm358 = vmor %vm356, %vm357
  %v359 = vsel %vm358, %v350, %v355
  %v360 = vrsqrt.pop %v218
  %v361 = vmul.f32 %v360, %v218
  %v362 = vmul.f32 %v361, %v360
  %v363 = vmul.f32 0.5, %v362
  %v364 = vsub.f32 1.5, %v363
  %v365 = vmul.f32 %v360, %v364
  %vm366 = vweird.f32 %v218
  %vm367 = vweird.f32 %v360
  %vm368 = vmor %vm366, %vm367
  %v369 = vsel %vm368, %v360, %v365
  %v370 = vrsqrt.pop %v219
  %v371 = vmul.f32 %v370, %v219
  %v372 = vmul.f32 %v371, %v370
  %v373 = vmul.f32 0.5, %v372
  %v374 = vsub.f32 1.5, %v373
  %v375 = vmul.f32 %v370, %v374
  %vm376 = vweird.f32 %v219
  %vm377 = vweird.f32 %v370
  %vm378 = vmor %vm376, %vm377
  %v379 = vsel %vm378, %v370, %v375
  %v380 = vmul.f32 %v108, %v229
  %v381 = vmul.f32 %v109, %v239
  %v382 = vmul.f32 %v110, %v249
  %v383 = vmul.f32 %v111, %v259
  %v384 = vmul.f32 %v112, %v269
  %v385 = vmul.f32 %v113, %v279
  %v386 = vmul.f32 %v114, %v289
  %v387 = vmul.f32 %v115, %v299
  %v388 = vmul.f32 %v116, %v309
  %v389 = vmul.f32 %v117, %v319
  %v390 = vmul.f32 %v118, %v329
  %v391 = vmul.f32 %v119, %v339
  %v392 = vmul.f32 %v120, %v349
  %v393 = vmul.f32 %v121, %v359
  %v394 = vmul.f32 %v122, %v369
  %v395 = vmul.f32 %v123, %v379
  %v396 = vld [vmem:[%s1] sm:$0x1]
  %v398 = vperm.slane %v396, 0
  %v400 = vmul.f32 %v380, %v398
  %v401 = vmul.f32 %v381, %v398
  %v402 = vmul.f32 %v382, %v398
  %v403 = vmul.f32 %v383, %v398
  %v404 = vmul.f32 %v384, %v398
  %v405 = vmul.f32 %v385, %v398
  %v406 = vmul.f32 %v386, %v398
  %v407 = vmul.f32 %v387, %v398
  %v408 = vmul.f32 %v388, %v398
  %v409 = vmul.f32 %v389, %v398
  %v410 = vmul.f32 %v390, %v398
  %v411 = vmul.f32 %v391, %v398
  %v412 = vmul.f32 %v392, %v398
  %v413 = vmul.f32 %v393, %v398
  %v414 = vmul.f32 %v394, %v398
  %v415 = vmul.f32 %v395, %v398
  %v416 = vld [vmem:[%s2] sm:$0x1]
  %v418 = vperm.slane %v416, 0
  %v420 = vadd.f32 %v400, %v418
  %v421 = vadd.f32 %v401, %v418
  %v422 = vadd.f32 %v402, %v418
  %v423 = vadd.f32 %v403, %v418
  %v424 = vadd.f32 %v404, %v418
  %v425 = vadd.f32 %v405, %v418
  %v426 = vadd.f32 %v406, %v418
  %v427 = vadd.f32 %v407, %v418
  %v428 = vadd.f32 %v408, %v418
  %v429 = vadd.f32 %v409, %v418
  %v430 = vadd.f32 %v410, %v418
  %v431 = vadd.f32 %v411, %v418
  %v432 = vadd.f32 %v412, %v418
  %v433 = vadd.f32 %v413, %v418
  %v434 = vadd.f32 %v414, %v418
  %v435 = vadd.f32 %v415, %v418
  %v436 = vld [vmem:[%s3] sm:$0xff]
  %v437 = vld [vmem:[%s3 + $0x8] sm:$0xff]
  %v438 = vld [vmem:[%s3 + $0x10] sm:$0xff]
  %v439 = vld [vmem:[%s3 + $0x18] sm:$0xff]
  %v440 = vld [vmem:[%s4] sm:$0x1]
  %v442 = vperm.slane %v440, 0
  %v445 = vsel %vm36, %v420, 0
  %v448 = vsel %vm36, %v421, 0
  %v451 = vsel %vm36, %v422, 0
  %v454 = vsel %vm36, %v423, 0
  %v457 = vsel %vm36, %v424, 0
  %v460 = vsel %vm36, %v425, 0
  %v463 = vsel %vm36, %v426, 0
  %v466 = vsel %vm36, %v427, 0
  %v469 = vsel %vm36, %v428, 0
  %v472 = vsel %vm36, %v429, 0
  %v475 = vsel %vm36, %v430, 0
  %v478 = vsel %vm36, %v431, 0
  %v481 = vsel %vm36, %v432, 0
  %v484 = vsel %vm36, %v433, 0
  %v487 = vsel %vm36, %v434, 0
  %v490 = vsel %vm36, %v435, 0
  %492 = vmatpush.msra.mxu0 0.0
  %493 = vmatpush.msra.mxu0 0.0
  %494 = vmatpush.msra.mxu0 0.0
  %495 = vmatpush.msra.mxu0 0.0
  %496 = vmatpush.msra.mxu0 0.0
  %497 = vmatpush.msra.mxu0 0.0
  %498 = vmatpush.msra.mxu0 0.0
  %499 = vmatpush.msra.mxu0 0.0
  %500 = vmatpush.msra.mxu0 0.0
  %501 = vmatpush.msra.mxu0 0.0
  %502 = vmatpush.msra.mxu0 0.0
  %503 = vmatpush.msra.mxu0 0.0
  %504 = vmatpush.msra.mxu0 %v439
  %505 = vmatpush.msra.mxu0 %v438
  %506 = vmatpush.msra.mxu0 %v437
  %507 = vmatpush.msra.mxu0 %v436
  %508 = vmatmul.f32.gmra.mxu0 %v445
  %v509 = vpop.f32.mrf.mxu0
  %v510 = vadd.f32 %v442, %v509
  %511 = vmatmul.f32.gmra.mxu0 %v448
  %v512 = vpop.f32.mrf.mxu0
  %v513 = vadd.f32 %v442, %v512
  %514 = vmatmul.f32.gmra.mxu0 %v451
  %v515 = vpop.f32.mrf.mxu0
  %v516 = vadd.f32 %v442, %v515
  %517 = vmatmul.f32.gmra.mxu0 %v454
  %v518 = vpop.f32.mrf.mxu0
  %v519 = vadd.f32 %v442, %v518
  %520 = vmatmul.f32.gmra.mxu0 %v457
  %v521 = vpop.f32.mrf.mxu0
  %v522 = vadd.f32 %v442, %v521
  %523 = vmatmul.f32.gmra.mxu0 %v460
  %v524 = vpop.f32.mrf.mxu0
  %v525 = vadd.f32 %v442, %v524
  %526 = vmatmul.f32.gmra.mxu0 %v463
  %v527 = vpop.f32.mrf.mxu0
  %v528 = vadd.f32 %v442, %v527
  %529 = vmatmul.f32.gmra.mxu0 %v466
  %v530 = vpop.f32.mrf.mxu0
  %v531 = vadd.f32 %v442, %v530
  %532 = vmatmul.f32.gmra.mxu0 %v469
  %v533 = vpop.f32.mrf.mxu0
  %v534 = vadd.f32 %v442, %v533
  %535 = vmatmul.f32.gmra.mxu0 %v472
  %v536 = vpop.f32.mrf.mxu0
  %v537 = vadd.f32 %v442, %v536
  %538 = vmatmul.f32.gmra.mxu0 %v475
  %v539 = vpop.f32.mrf.mxu0
  %v540 = vadd.f32 %v442, %v539
  %541 = vmatmul.f32.gmra.mxu0 %v478
  %v542 = vpop.f32.mrf.mxu0
  %v543 = vadd.f32 %v442, %v542
  %544 = vmatmul.f32.gmra.mxu0 %v481
  %v545 = vpop.f32.mrf.mxu0
  %v546 = vadd.f32 %v442, %v545
  %547 = vmatmul.f32.gmra.mxu0 %v484
  %v548 = vpop.f32.mrf.mxu0
  %v549 = vadd.f32 %v442, %v548
  %550 = vmatmul.f32.gmra.mxu0 %v487
  %v551 = vpop.f32.mrf.mxu0
  %v552 = vadd.f32 %v442, %v551
  %553 = vmatmul.f32.gmra.mxu0 %v490
  %v554 = vpop.f32.mrf.mxu0
  %v555 = vadd.f32 %v442, %v554
  %556 = vdwg.mxu0
  %557 = vst.msk [vmem:[%s5] sm:$0xff] %vm36, %v510
  %558 = vst.msk [vmem:[%s5 + $0x8] sm:$0xff] %vm36, %v513
  %559 = vst.msk [vmem:[%s5 + $0x10] sm:$0xff] %vm36, %v516
  %560 = vst.msk [vmem:[%s5 + $0x18] sm:$0xff] %vm36, %v519
  %561 = vst.msk [vmem:[%s5 + $0x20] sm:$0xff] %vm36, %v522
  %562 = vst.msk [vmem:[%s5 + $0x28] sm:$0xff] %vm36, %v525
  %563 = vst.msk [vmem:[%s5 + $0x30] sm:$0xff] %vm36, %v528
  %564 = vst.msk [vmem:[%s5 + $0x38] sm:$0xff] %vm36, %v531
  %565 = vst.msk [vmem:[%s5 + $0x40] sm:$0xff] %vm36, %v534
  %566 = vst.msk [vmem:[%s5 + $0x48] sm:$0xff] %vm36, %v537
  %567 = vst.msk [vmem:[%s5 + $0x50] sm:$0xff] %vm36, %v540
  %568 = vst.msk [vmem:[%s5 + $0x58] sm:$0xff] %vm36, %v543
  %569 = vst.msk [vmem:[%s5 + $0x60] sm:$0xff] %vm36, %v546
  %570 = vst.msk [vmem:[%s5 + $0x68] sm:$0xff] %vm36, %v549
  %571 = vst.msk [vmem:[%s5 + $0x70] sm:$0xff] %vm36, %v552
  %572 = vst.msk [vmem:[%s5 + $0x78] sm:$0xff] %vm36, %v555
  // Predicated region
  $region22: #{tpu_custom_call.1} parent=0 // pred_check
    _
  $region23: #{tpu_custom_call.1} parent=0 // pred_check_branch
    %574 = sbr.rel (0) target = $region25
  $region24: #{tpu_custom_call.1} parent=0 // pred_region
    _
  $region25: #{tpu_custom_call.1} parent=0 // pred_fallthru
    _
  // Predicated region
  $region26: #{tpu_custom_call.1} parent=0 // pred_check
    _
  $region27: #{tpu_custom_call.1} parent=0 // pred_check_branch
    %576 = sbr.rel (0) target = $region29
  $region28: #{tpu_custom_call.1} parent=0 // pred_region
    _
  $region29: #{tpu_custom_call.1} parent=0 // pred_fallthru
    _

</llo_original>
